<compile_context>
chip_gen: v7x
topology: tpu7x:2x2x1
jax: 0.10.0
libtpu: 0.0.40
codegen_flags: <defaults>
</compile_context>

<pallas_src>
import jax
import jax.numpy as jnp
from jax.experimental import pallas as pl
from jax.experimental.pallas import tpu as pltpu

# Small, self-consistent synthetic shapes (img_shape is a free global in the
# original script; we pick a small one).
IMG_SHAPE = (1, 16, 16)          # (C, H, W)
IN_DIM = 1 * 16 * 16             # = 256
H1 = 512
H2 = 256
BATCH = 6                        # deliberately not a multiple of 8 (tests padding)
MIN_TB = 8                       # sublane granularity
MAX_TB = 512                     # batch tile cap


def _round_up(x, m):
    return ((x + m - 1) // m) * m


def _leaky_relu(x, slope=0.2):
    # max(x, slope*x) == LeakyReLU(slope) for 0 < slope < 1.
    return jnp.maximum(x, slope * x)


def discriminator_kernel(x_ref, w1_ref, b1_ref, w2_ref, b2_ref, w3_ref,
                         b3_ref, out_ref):
    """One batch tile of the fused MLP.

    x/w1/w2 are bf16 (MXU), accumulation + bias/activation math in f32 (VPU).
    Layer 3 is a VPU multiply + lane reduction; only (tb, 1) f32 is stored.
    """
    # Layer 1.
    h1 = jnp.dot(x_ref[...], w1_ref[...],
                 preferred_element_type=jnp.float32)               # (tb, 512) f32
    h1 = _leaky_relu(h1 + b1_ref[...])

    # Layer 2.
    h2 = jnp.dot(h1.astype(jnp.bfloat16), w2_ref[...],
                 preferred_element_type=jnp.float32)               # (tb, 256) f32
    h2 = _leaky_relu(h2 + b2_ref[...])

    # Layer 3: sum_k h2[:, k] * w3[k]; reduce BEFORE adding the scalar bias.
    out = jnp.sum(h2 * w3_ref[...], axis=-1, keepdims=True)        # (tb, 1) f32
    out_ref[...] = out + b3_ref[0, 0]                              # bias from SMEM


def _choose_tile(b):
    """8-aligned tile size + tile count: minimal padding, >=2 tiles if possible."""
    n_tiles = max(pl.cdiv(b, MAX_TB), 2 if b >= 2 * MIN_TB else 1)
    tb = _round_up(pl.cdiv(b, n_tiles), MIN_TB)
    n_tiles = pl.cdiv(b, tb)
    return tb, n_tiles


def discriminator_forward(img, params):
    """img: (B, C, H, W). Returns validity of shape (B,) in float32."""
    b = img.shape[0]
    w1, b1, w2, b2, w3, b3 = params

    tb, n_tiles = _choose_tile(b)
    b_pad = tb * n_tiles

    # Flatten + cast to bf16 in the wrapper (halves the input DMA bytes).
    x = img.reshape(b, -1).astype(jnp.bfloat16)
    if b_pad != b:
        x = jnp.pad(x, ((0, b_pad - b), (0, 0)))   # <=~8 rows/tile by construction

    const = lambda i: (0, 0)       # weights/biases stay VMEM-resident across grid
    out = pl.pallas_call(
        discriminator_kernel,
        out_shape=jax.ShapeDtypeStruct((b_pad, 1), jnp.float32),
        grid=(n_tiles,),
        in_specs=[
            pl.BlockSpec((tb, IN_DIM), lambda i: (i, 0)),          # x tile (bf16)
            pl.BlockSpec((IN_DIM, H1), const),                     # w1 (bf16)
            pl.BlockSpec((1, H1), const),                          # b1 (f32)
            pl.BlockSpec((H1, H2), const),                         # w2 (bf16)
            pl.BlockSpec((1, H2), const),                          # b2 (f32)
            pl.BlockSpec((1, H2), const),                          # w3 row (f32)
            pl.BlockSpec(memory_space=pltpu.MemorySpace.SMEM),     # b3 scalar
        ],
        out_specs=pl.BlockSpec((tb, 1), lambda i: (i, 0)),         # 4 B/row writeback
        compiler_params=pltpu.CompilerParams(
            dimension_semantics=("parallel",)),                    # v7x: 2 TCs
    )(x, w1, b1, w2, b2, w3, b3)

    return out[:b, 0]                                              # (B,)


def init_params(key):
    """Deterministic init mimicking nn.Linear (uniform +/- 1/sqrt(fan_in)).

    w1/w2 stored transposed (in, out) in bf16; biases f32. The final weight is
    stored as a (1, 256) f32 row (used on the VPU), its bias as a (1,1) SMEM
    scalar.
    """
    ks = jax.random.split(key, 6)

    def linear(kw, kb, fan_in, fan_out):
        bound = 1.0 / jnp.sqrt(fan_in)
        w = jax.random.uniform(kw, (fan_in, fan_out), jnp.float32, -bound, bound)
        bb = jax.random.uniform(kb, (1, fan_out), jnp.float32, -bound, bound)
        return w, bb

    w1, b1 = linear(ks[0], ks[1], IN_DIM, H1)
    w2, b2 = linear(ks[2], ks[3], H1, H2)
    w3, b3 = linear(ks[4], ks[5], H2, 1)           # w3: (256, 1), b3: (1, 1)

    return (w1.astype(jnp.bfloat16), b1,
            w2.astype(jnp.bfloat16), b2,
            w3.T,                                   # (1, 256) f32 row
            b3)                                     # (1, 1) f32 scalar


def reference_forward(img, params):
    """Pure-JAX reference mirroring the kernel math (bf16 operands, f32 acc)."""
    w1, b1, w2, b2, w3, b3 = params
    x = img.reshape(img.shape[0], -1).astype(jnp.bfloat16)
    h1 = _leaky_relu(jnp.dot(x, w1, preferred_element_type=jnp.float32) + b1)
    h2 = _leaky_relu(jnp.dot(h1.astype(jnp.bfloat16), w2,
                             preferred_element_type=jnp.float32) + b2)
    return jnp.sum(h2 * w3, axis=-1) + b3[0, 0]


if __name__ == "__main__":
    key = jax.random.PRNGKey(0)
    k_img, k_param = jax.random.split(key)

    img = jax.random.normal(k_img, (BATCH,) + IMG_SHAPE, dtype=jnp.float32)
    params = init_params(k_param)

    validity = discriminator_forward(img, params)
    validity = jax.block_until_ready(validity)

    ref = reference_forward(img, params)
    assert validity.shape == (BATCH,)
    assert jnp.allclose(validity, ref, atol=1e-3, rtol=1e-3)

    print("KERNEL_OK")
</pallas_src>

<mosaic_0001>
module attributes {stable_mosaic.version = 11 : i64} {
  func.func @discriminator_kernel(%arg0: i32, %arg1: memref<8x256xbf16, #tpu.memory_space<vmem>>, %arg2: memref<256x512xbf16, #tpu.memory_space<vmem>>, %arg3: memref<1x512xf32, #tpu.memory_space<vmem>>, %arg4: memref<512x256xbf16, #tpu.memory_space<vmem>>, %arg5: memref<1x256xf32, #tpu.memory_space<vmem>>, %arg6: memref<1x256xf32, #tpu.memory_space<vmem>>, %arg7: memref<1x1xf32, #tpu.memory_space<smem>>, %arg8: memref<8x1xf32, #tpu.memory_space<vmem>>) attributes {dimension_semantics = [#tpu.dimension_semantics<parallel>], iteration_bounds = array<i64: 1>, scalar_prefetch = 0 : i64, scratch_operands = 0 : i64, tpu.core_type = #tpu.core_type<tc>, window_params = [{transform_indices = @transform_0, window_bounds = array<i64: 8, 256>}, {pipeline_mode = #tpu.pipeline_mode<synchronous>, transform_indices = @transform_1, window_bounds = array<i64: 256, 512>}, {pipeline_mode = #tpu.pipeline_mode<synchronous>, transform_indices = @transform_2, window_bounds = array<i64: 1, 512>}, {pipeline_mode = #tpu.pipeline_mode<synchronous>, transform_indices = @transform_3, window_bounds = array<i64: 512, 256>}, {pipeline_mode = #tpu.pipeline_mode<synchronous>, transform_indices = @transform_4, window_bounds = array<i64: 1, 256>}, {pipeline_mode = #tpu.pipeline_mode<synchronous>, transform_indices = @transform_5, window_bounds = array<i64: 1, 256>}, {transform_indices = @transform_6, window_bounds = array<i64: 1, 1>}, {transform_indices = @transform_7, window_bounds = array<i64: 8, 1>}]} {
    %c0 = arith.constant 0 : index
    %c0_0 = arith.constant 0 : index
    %0 = vector.load %arg1[%c0, %c0_0] : memref<8x256xbf16, #tpu.memory_space<vmem>>, vector<8x256xbf16>
    %c0_1 = arith.constant 0 : index
    %c0_2 = arith.constant 0 : index
    %1 = vector.load %arg2[%c0_1, %c0_2] : memref<256x512xbf16, #tpu.memory_space<vmem>>, vector<256x512xbf16>
    %cst = arith.constant dense<0.000000e+00> : vector<8x512xf32>
    %2 = tpu.matmul %0, %1, %cst {dimension_numbers = #tpu.dot_dimension_numbers<[1], [0], [0], [1], [0, 0, 1, 1], [], []>} : vector<8x256xbf16>, vector<256x512xbf16>, vector<8x512xf32> -> vector<8x512xf32>
    %c0_3 = arith.constant 0 : index
    %c0_4 = arith.constant 0 : index
    %3 = vector.load %arg3[%c0_3, %c0_4] : memref<1x512xf32, #tpu.memory_space<vmem>>, vector<1x512xf32>
    %4 = vector.broadcast %3 : vector<1x512xf32> to vector<8x512xf32>
    %5 = arith.addf %2, %4 : vector<8x512xf32>
    %cst_5 = arith.constant 2.000000e-01 : f32
    %6 = vector.broadcast %cst_5 : f32 to vector<8x512xf32>
    %7 = arith.mulf %6, %5 : vector<8x512xf32>
    %8 = arith.maximumf %5, %7 : vector<8x512xf32>
    %9 = arith.truncf %8 : vector<8x512xf32> to vector<8x512xbf16>
    %c0_6 = arith.constant 0 : index
    %c0_7 = arith.constant 0 : index
    %10 = vector.load %arg4[%c0_6, %c0_7] : memref<512x256xbf16, #tpu.memory_space<vmem>>, vector<512x256xbf16>
    %cst_8 = arith.constant dense<0.000000e+00> : vector<8x256xf32>
    %11 = tpu.matmul %9, %10, %cst_8 {dimension_numbers = #tpu.dot_dimension_numbers<[1], [0], [0], [1], [0, 0, 1, 1], [], []>} : vector<8x512xbf16>, vector<512x256xbf16>, vector<8x256xf32> -> vector<8x256xf32>
    %c0_9 = arith.constant 0 : index
    %c0_10 = arith.constant 0 : index
    %12 = vector.load %arg5[%c0_9, %c0_10] : memref<1x256xf32, #tpu.memory_space<vmem>>, vector<1x256xf32>
    %13 = vector.broadcast %12 : vector<1x256xf32> to vector<8x256xf32>
    %14 = arith.addf %11, %13 : vector<8x256xf32>
    %cst_11 = arith.constant 2.000000e-01 : f32
    %15 = vector.broadcast %cst_11 : f32 to vector<8x256xf32>
    %16 = arith.mulf %15, %14 : vector<8x256xf32>
    %17 = arith.maximumf %14, %16 : vector<8x256xf32>
    %c0_12 = arith.constant 0 : index
    %c0_13 = arith.constant 0 : index
    %18 = vector.load %arg6[%c0_12, %c0_13] : memref<1x256xf32, #tpu.memory_space<vmem>>, vector<1x256xf32>
    %19 = vector.broadcast %18 : vector<1x256xf32> to vector<8x256xf32>
    %20 = arith.mulf %17, %19 : vector<8x256xf32>
    %cst_14 = arith.constant dense<0.000000e+00> : vector<8xf32>
    %21 = vector.multi_reduction <add>, %20, %cst_14 [1] : vector<8x256xf32> to vector<8xf32>
    %22 = vector.shape_cast %21 : vector<8xf32> to vector<8x1xf32>
    %c0_15 = arith.constant 0 : index
    %c0_16 = arith.constant 0 : index
    %23 = memref.load %arg7[%c0_15, %c0_16] : memref<1x1xf32, #tpu.memory_space<smem>>
    %24 = vector.broadcast %23 : f32 to vector<8x1xf32>
    %25 = arith.addf %22, %24 : vector<8x1xf32>
    %c0_17 = arith.constant 0 : index
    %c0_18 = arith.constant 0 : index
    %26 = vector.load %arg8[%c0_17, %c0_18] : memref<8x1xf32, #tpu.memory_space<vmem>>, vector<8x1xf32>
    tpu.vector_store %arg8[%c0_17, %c0_18], %25 {strides = array<i32>} : memref<8x1xf32, #tpu.memory_space<vmem>>, vector<8x1xf32>,
    return
  }
  func.func @transform_0(%arg0: i32) -> (i32, i32) {
    %c0_i32 = arith.constant 0 : i32
    %c0_i32_0 = arith.constant 0 : i32
    return %arg0, %c0_i32 : i32, i32
  }
  func.func @transform_1(%arg0: i32) -> (i32, i32) {
    %c0_i32 = arith.constant 0 : i32
    %c0_i32_0 = arith.constant 0 : i32
    %c0_i32_1 = arith.constant 0 : i32
    return %c0_i32, %c0_i32_0 : i32, i32
  }
  func.func @transform_2(%arg0: i32) -> (i32, i32) {
    %c0_i32 = arith.constant 0 : i32
    %c0_i32_0 = arith.constant 0 : i32
    %c0_i32_1 = arith.constant 0 : i32
    return %c0_i32, %c0_i32_0 : i32, i32
  }
  func.func @transform_3(%arg0: i32) -> (i32, i32) {
    %c0_i32 = arith.constant 0 : i32
    %c0_i32_0 = arith.constant 0 : i32
    %c0_i32_1 = arith.constant 0 : i32
    return %c0_i32, %c0_i32_0 : i32, i32
  }
  func.func @transform_4(%arg0: i32) -> (i32, i32) {
    %c0_i32 = arith.constant 0 : i32
    %c0_i32_0 = arith.constant 0 : i32
    %c0_i32_1 = arith.constant 0 : i32
    return %c0_i32, %c0_i32_0 : i32, i32
  }
  func.func @transform_5(%arg0: i32) -> (i32, i32) {
    %c0_i32 = arith.constant 0 : i32
    %c0_i32_0 = arith.constant 0 : i32
    %c0_i32_1 = arith.constant 0 : i32
    return %c0_i32, %c0_i32_0 : i32, i32
  }
  func.func @transform_6(%arg0: i32) -> (i32, i32) {
    %c0_i32 = arith.constant 0 : i32
    %c0_i32_0 = arith.constant 0 : i32
    %c0_i32_1 = arith.constant 0 : i32
    return %c0_i32, %c0_i32_0 : i32, i32
  }
  func.func @transform_7(%arg0: i32) -> (i32, i32) {
    %c0_i32 = arith.constant 0 : i32
    %c0_i32_0 = arith.constant 0 : i32
    return %arg0, %c0_i32 : i32, i32
  }
}

</mosaic_0001>

<llo_original>
// kernel: tpu_custom_call.1
$region0: #{tpu_custom_call.1}
  #allocation0 [shape = 'u32[]', space=smem, size = 0x4, offset = 0x4, fixed_abs, tag = 'smem constant byte address 0x4 - core index']
  #allocation1 [shape = 'u32[144,128]{1,0:T(1,128)}', space=vmem, size = 0x12000, scoped, tag = 'internal scratch']
  #allocation2 [shape = 'f32[1,1]{1,0:T(1,128)S(6)}', space=smem, size = 0x200, scoped, tag = 'scoped memory for tpu_custom_call.1']
  %s0 = inlined_call_operand.hbm [shape: bf16[8,256], index: 0, kind: input, shape index: {}]
  %s1 = inlined_call_operand.hbm [shape: bf16[256,512], index: 1, kind: input, shape index: {}]
  %s2 = inlined_call_operand.vmem [shape: f32[1,512], index: 2, kind: input, shape index: {}]
  %s3 = inlined_call_operand.hbm [shape: bf16[512,256], index: 3, kind: input, shape index: {}]
  %s4 = inlined_call_operand.vmem [shape: f32[1,256], index: 4, kind: input, shape index: {}]
  %s5 = inlined_call_operand.vmem [shape: f32[1,256], index: 5, kind: input, shape index: {}]
  %s6 = inlined_call_operand.<no memory space> [shape: f32[1,1], index: 6, kind: input, shape index: {}]
  %s7 = inlined_call_operand.vmem [shape: f32[8,1], index: 7, kind: output, shape index: {}]
  %s8 = sld [smem:[#allocation0]]
  $region50: #{tpu_custom_call.1} parent=0
    _
  %s10 = ssub.s32 1, %s8
  %s11 = scalar_select 0, %s10, %s8
  %12 = sst [smem:[#allocation2]] %s6
  $region1: #{tpu_custom_call.1} parent=0
    #allocation3 [shape = 'u8[4096]{0}', space=vmem, size = 0x1000, scoped, tag = 'input window, operand 0, single buffered']
    #allocation4 [shape = 's32[1]{0}', space=sflag, size = 0x4, scoped, tag = 'scoped memory for tpu_custom_call.1']
    #allocation5 [shape = 'u8[262144]{0}', space=vmem, size = 0x40000, scoped, tag = 'input window, operand 1, single buffered']
    #allocation6 [shape = 's32[1]{0}', space=sflag, size = 0x4, scoped, tag = 'scoped memory for tpu_custom_call.1']
    #allocation7 [shape = 'u8[262144]{0}', space=vmem, size = 0x40000, scoped, tag = 'input window, operand 3, single buffered']
    %13 = vsyncpa [#allocation4], 0
    %14 = vsyncpa [#allocation6], 0
    // Predicated region
    $region2: #{tpu_custom_call.1} parent=1 // pred_check
      _
    $region3: #{tpu_custom_call.1} parent=1 // pred_check_branch
      %16 = sbr.rel (0) target = $region5
    $region4: #{tpu_custom_call.1} parent=1 // pred_region
      %s18 = ssub.s32 128, 128
      %19 = vsyncadd [#allocation4], %s18
      %s21 = sshll.u32 [#allocation3], 4
      %s22 = int_to_ptr.vmem [resolvable:$true] %s21
      %24 = dma.hbm_to_vmem [thread:$0]  %s0, 128, %s22, [#allocation4]
    $region5: #{tpu_custom_call.1} parent=1 // pred_fallthru
      _
    // Predicated region
    $region6: #{tpu_custom_call.1} parent=1 // pred_check
      _
    $region7: #{tpu_custom_call.1} parent=1 // pred_check_branch
      %26 = sbr.rel (0) target = $region9
    $region8: #{tpu_custom_call.1} parent=1 // pred_region
      %s28 = ssub.s32 8192, 8192
      %29 = vsyncadd [#allocation6], %s28
      %s30 = sshll.u32 [#allocation5], 4
      %s31 = int_to_ptr.vmem [resolvable:$true] %s30
      %36 = dma.hbm_to_vmem [thread:$0]  %s1, 8192, %s31, [#allocation6], 256, 256, 16
    $region9: #{tpu_custom_call.1} parent=1 // pred_fallthru
      _
    // Predicated region
    $region10: #{tpu_custom_call.1} parent=1 // pred_check
      _
    $region11: #{tpu_custom_call.1} parent=1 // pred_check_branch
      %38 = sbr.rel (0) target = $region13
    $region12: #{tpu_custom_call.1} parent=1 // pred_region
      _
    $region13: #{tpu_custom_call.1} parent=1 // pred_fallthru
      _
    // Predicated region
    $region14: #{tpu_custom_call.1} parent=1 // pred_check
      _
    $region15: #{tpu_custom_call.1} parent=1 // pred_check_branch
      %40 = sbr.rel (0) target = $region17
    $region16: #{tpu_custom_call.1} parent=1 // pred_region
      %s42 = ssub.s32 8192, 8192
      %43 = vsyncadd [#allocation6], %s42
      %s44 = sshll.u32 [#allocation7], 4
      %s45 = int_to_ptr.vmem [resolvable:$true] %s44
      %50 = dma.hbm_to_vmem [thread:$0]  %s3, 8192, %s45, [#allocation6], 128, 128, 8
    $region17: #{tpu_custom_call.1} parent=1 // pred_fallthru
      _
    // Predicated region
    $region18: #{tpu_custom_call.1} parent=1 // pred_check
      _
    $region19: #{tpu_custom_call.1} parent=1 // pred_check_branch
      %52 = sbr.rel (0) target = $region21
    $region20: #{tpu_custom_call.1} parent=1 // pred_region
      _
    $region21: #{tpu_custom_call.1} parent=1 // pred_fallthru
      _
    // Predicated region
    $region22: #{tpu_custom_call.1} parent=1 // pred_check
      _
    $region23: #{tpu_custom_call.1} parent=1 // pred_check_branch
      %54 = sbr.rel (0) target = $region25
    $region24: #{tpu_custom_call.1} parent=1 // pred_region
      _
    $region25: #{tpu_custom_call.1} parent=1 // pred_fallthru
      _
    // Predicated region
    $region26: #{tpu_custom_call.1} parent=1 // pred_check
      _
    $region27: #{tpu_custom_call.1} parent=1 // pred_check_branch
      %56 = sbr.rel (0) target = $region29
    $region28: #{tpu_custom_call.1} parent=1 // pred_region
      _
    $region29: #{tpu_custom_call.1} parent=1 // pred_fallthru
      _
    // Predicated region
    $region30: #{tpu_custom_call.1} parent=1 // pred_check
      _
    $region31: #{tpu_custom_call.1} parent=1 // pred_check_branch
      %58 = sbr.rel (0) target = $region33
    $region32: #{tpu_custom_call.1} parent=1 // pred_region
      %59 = dma.done [#allocation4], 128
    $region33: #{tpu_custom_call.1} parent=1 // pred_fallthru
      _
    // Predicated region
    $region34: #{tpu_custom_call.1} parent=1 // pred_check
      _
    $region35: #{tpu_custom_call.1} parent=1 // pred_check_branch
      %61 = sbr.rel (0) target = $region37
    $region36: #{tpu_custom_call.1} parent=1 // pred_region
      %62 = dma.done [#allocation6], 8192
    $region37: #{tpu_custom_call.1} parent=1 // pred_fallthru
      _
    // Predicated region
    $region38: #{tpu_custom_call.1} parent=1 // pred_check
      _
    $region39: #{tpu_custom_call.1} parent=1 // pred_check_branch
      %64 = sbr.rel (0) target = $region41
    $region40: #{tpu_custom_call.1} parent=1 // pred_region
      %65 = dma.done [#allocation6], 8192
    $region41: #{tpu_custom_call.1} parent=1 // pred_fallthru
      _
    %v66 = vld [vmem:[#allocation3] sm:$0xff]
    %v67 = vld [vmem:[#allocation5] sm:$0xff]
    %v68 = vld [vmem:[#allocation5 + $0x8] sm:$0xff]
    %v69 = vld [vmem:[#allocation5 + $0x10] sm:$0xff]
    %v70 = vld [vmem:[#allocation5 + $0x18] sm:$0xff]
    %v71 = vld [vmem:[#allocation5 + $0x20] sm:$0xff]
    %v72 = vld [vmem:[#allocation5 + $0x28] sm:$0xff]
    %v73 = vld [vmem:[#allocation5 + $0x30] sm:$0xff]
    %v74 = vld [vmem:[#allocation5 + $0x38] sm:$0xff]
    %v75 = vld [vmem:[#allocation5 + $0x40] sm:$0xff]
    %v76 = vld [vmem:[#allocation5 + $0x48] sm:$0xff]
    %v77 = vld [vmem:[#allocation5 + $0x50] sm:$0xff]
    %v78 = vld [vmem:[#allocation5 + $0x58] sm:$0xff]
    %v79 = vld [vmem:[#allocation5 + $0x60] sm:$0xff]
    %v80 = vld [vmem:[#allocation5 + $0x68] sm:$0xff]
    %v81 = vld [vmem:[#allocation5 + $0x70] sm:$0xff]
    %v82 = vld [vmem:[#allocation5 + $0x78] sm:$0xff]
    %v83 = vld [vmem:[#allocation5 + $0x80] sm:$0xff]
    %v84 = vld [vmem:[#allocation5 + $0x88] sm:$0xff]
    %v85 = vld [vmem:[#allocation5 + $0x90] sm:$0xff]
    %v86 = vld [vmem:[#allocation5 + $0x98] sm:$0xff]
    %v87 = vld [vmem:[#allocation5 + $0xa0] sm:$0xff]
    %v88 = vld [vmem:[#allocation5 + $0xa8] sm:$0xff]
    %v89 = vld [vmem:[#allocation5 + $0xb0] sm:$0xff]
    %v90 = vld [vmem:[#allocation5 + $0xb8] sm:$0xff]
    %v91 = vld [vmem:[#allocation5 + $0xc0] sm:$0xff]
    %v92 = vld [vmem:[#allocation5 + $0xc8] sm:$0xff]
    %v93 = vld [vmem:[#allocation5 + $0xd0] sm:$0xff]
    %v94 = vld [vmem:[#allocation5 + $0xd8] sm:$0xff]
    %v95 = vld [vmem:[#allocation5 + $0xe0] sm:$0xff]
    %v96 = vld [vmem:[#allocation5 + $0xe8] sm:$0xff]
    %v97 = vld [vmem:[#allocation5 + $0xf0] sm:$0xff]
    %v98 = vld [vmem:[#allocation5 + $0xf8] sm:$0xff]
    %v99 = vld [vmem:[#allocation5 + $0x100] sm:$0xff]
    %v100 = vld [vmem:[#allocation5 + $0x108] sm:$0xff]
    %v101 = vld [vmem:[#allocation5 + $0x110] sm:$0xff]
    %v102 = vld [vmem:[#allocation5 + $0x118] sm:$0xff]
    %v103 = vld [vmem:[#allocation5 + $0x120] sm:$0xff]
    %v104 = vld [vmem:[#allocation5 + $0x128] sm:$0xff]
    %v105 = vld [vmem:[#allocation5 + $0x130] sm:$0xff]
    %v106 = vld [vmem:[#allocation5 + $0x138] sm:$0xff]
    %v107 = vld [vmem:[#allocation5 + $0x140] sm:$0xff]
    %v108 = vld [vmem:[#allocation5 + $0x148] sm:$0xff]
    %v109 = vld [vmem:[#allocation5 + $0x150] sm:$0xff]
    %v110 = vld [vmem:[#allocation5 + $0x158] sm:$0xff]
    %v111 = vld [vmem:[#allocation5 + $0x160] sm:$0xff]
    %v112 = vld [vmem:[#allocation5 + $0x168] sm:$0xff]
    %v113 = vld [vmem:[#allocation5 + $0x170] sm:$0xff]
    %v114 = vld [vmem:[#allocation5 + $0x178] sm:$0xff]
    %v115 = vld [vmem:[#allocation5 + $0x180] sm:$0xff]
    %v116 = vld [vmem:[#allocation5 + $0x188] sm:$0xff]
    %v117 = vld [vmem:[#allocation5 + $0x190] sm:$0xff]
    %v118 = vld [vmem:[#allocation5 + $0x198] sm:$0xff]
    %v119 = vld [vmem:[#allocation5 + $0x1a0] sm:$0xff]
    %v120 = vld [vmem:[#allocation5 + $0x1a8] sm:$0xff]
    %v121 = vld [vmem:[#allocation5 + $0x1b0] sm:$0xff]
    %v122 = vld [vmem:[#allocation5 + $0x1b8] sm:$0xff]
    %v123 = vld [vmem:[#allocation5 + $0x1c0] sm:$0xff]
    %v124 = vld [vmem:[#allocation5 + $0x1c8] sm:$0xff]
    %v125 = vld [vmem:[#allocation5 + $0x1d0] sm:$0xff]
    %v126 = vld [vmem:[#allocation5 + $0x1d8] sm:$0xff]
    %v127 = vld [vmem:[#allocation5 + $0x1e0] sm:$0xff]
    %v128 = vld [vmem:[#allocation5 + $0x1e8] sm:$0xff]
    %v129 = vld [vmem:[#allocation5 + $0x1f0] sm:$0xff]
    %v130 = vld [vmem:[#allocation5 + $0x1f8] sm:$0xff]
    %v131 = vld [vmem:[%s2] sm:$0xf]
    %v133 = vlaneseq
    %v134 = vshrl.u32 %v133, 7
    %v135 = vsub.s32 0, %v134
    %v136 = vrot.slane %v131, %v135
    %v137 = vlaneseq
    %v138 = vshrl.u32 %v137, 7
    %v139 = vsub.s32 1, %v138
    %v140 = vrot.slane %v131, %v139
    %v141 = vlaneseq
    %v142 = vshrl.u32 %v141, 7
    %v143 = vsub.s32 2, %v142
    %v144 = vrot.slane %v131, %v143
    %v145 = vlaneseq
    %v146 = vshrl.u32 %v145, 7
    %v147 = vsub.s32 3, %v146
    %v148 = vrot.slane %v131, %v147
    %v154 = vunpack.c.l.b16 %v66
    %v155 = vunpack.c.h.b16 %v66
    %v156 = vpack.c.b16 %v154, %v154
    %v157 = vpack.c.b16 %v155, %v155
    %v224 = vunpack.c.l.b16 %v67
    %v225 = vunpack.c.h.b16 %v67
    %v226 = vunpack.c.l.b16 %v68
    %v227 = vunpack.c.h.b16 %v68
    %v228 = vunpack.c.l.b16 %v69
    %v229 = vunpack.c.h.b16 %v69
    %v230 = vunpack.c.l.b16 %v70
    %v231 = vunpack.c.h.b16 %v70
    %v232 = vunpack.c.l.b16 %v71
    %v233 = vunpack.c.h.b16 %v71
    %v234 = vunpack.c.l.b16 %v72
    %v235 = vunpack.c.h.b16 %v72
    %v236 = vunpack.c.l.b16 %v73
    %v237 = vunpack.c.h.b16 %v73
    %v238 = vunpack.c.l.b16 %v74
    %v239 = vunpack.c.h.b16 %v74
    %v240 = vunpack.c.l.b16 %v75
    %v241 = vunpack.c.h.b16 %v75
    %v242 = vunpack.c.l.b16 %v76
    %v243 = vunpack.c.h.b16 %v76
    %v244 = vunpack.c.l.b16 %v77
    %v245 = vunpack.c.h.b16 %v77
    %v246 = vunpack.c.l.b16 %v78
    %v247 = vunpack.c.h.b16 %v78
    %v248 = vunpack.c.l.b16 %v79
    %v249 = vunpack.c.h.b16 %v79
    %v250 = vunpack.c.l.b16 %v80
    %v251 = vunpack.c.h.b16 %v80
    %v252 = vunpack.c.l.b16 %v81
    %v253 = vunpack.c.h.b16 %v81
    %v254 = vunpack.c.l.b16 %v82
    %v255 = vunpack.c.h.b16 %v82
    %v256 = vunpack.c.l.b16 %v83
    %v257 = vunpack.c.h.b16 %v83
    %v258 = vunpack.c.l.b16 %v84
    %v259 = vunpack.c.h.b16 %v84
    %v260 = vunpack.c.l.b16 %v85
    %v261 = vunpack.c.h.b16 %v85
    %v262 = vunpack.c.l.b16 %v86
    %v263 = vunpack.c.h.b16 %v86
    %v264 = vunpack.c.l.b16 %v87
    %v265 = vunpack.c.h.b16 %v87
    %v266 = vunpack.c.l.b16 %v88
    %v267 = vunpack.c.h.b16 %v88
    %v268 = vunpack.c.l.b16 %v89
    %v269 = vunpack.c.h.b16 %v89
    %v270 = vunpack.c.l.b16 %v90
    %v271 = vunpack.c.h.b16 %v90
    %v272 = vunpack.c.l.b16 %v91
    %v273 = vunpack.c.h.b16 %v91
    %v274 = vunpack.c.l.b16 %v92
    %v275 = vunpack.c.h.b16 %v92
    %v276 = vunpack.c.l.b16 %v93
    %v277 = vunpack.c.h.b16 %v93
    %v278 = vunpack.c.l.b16 %v94
    %v279 = vunpack.c.h.b16 %v94
    %v280 = vunpack.c.l.b16 %v95
    %v281 = vunpack.c.h.b16 %v95
    %v282 = vunpack.c.l.b16 %v96
    %v283 = vunpack.c.h.b16 %v96
    %v284 = vunpack.c.l.b16 %v97
    %v285 = vunpack.c.h.b16 %v97
    %v286 = vunpack.c.l.b16 %v98
    %v287 = vunpack.c.h.b16 %v98
    %v288 = vunpack.c.l.b16 %v99
    %v289 = vunpack.c.h.b16 %v99
    %v290 = vunpack.c.l.b16 %v100
    %v291 = vunpack.c.h.b16 %v100
    %v292 = vunpack.c.l.b16 %v101
    %v293 = vunpack.c.h.b16 %v101
    %v294 = vunpack.c.l.b16 %v102
    %v295 = vunpack.c.h.b16 %v102
    %v296 = vunpack.c.l.b16 %v103
    %v297 = vunpack.c.h.b16 %v103
    %v298 = vunpack.c.l.b16 %v104
    %v299 = vunpack.c.h.b16 %v104
    %v300 = vunpack.c.l.b16 %v105
    %v301 = vunpack.c.h.b16 %v105
    %v302 = vunpack.c.l.b16 %v106
    %v303 = vunpack.c.h.b16 %v106
    %v304 = vunpack.c.l.b16 %v107
    %v305 = vunpack.c.h.b16 %v107
    %v306 = vunpack.c.l.b16 %v108
    %v307 = vunpack.c.h.b16 %v108
    %v308 = vunpack.c.l.b16 %v109
    %v309 = vunpack.c.h.b16 %v109
    %v310 = vunpack.c.l.b16 %v110
    %v311 = vunpack.c.h.b16 %v110
    %v312 = vunpack.c.l.b16 %v111
    %v313 = vunpack.c.h.b16 %v111
    %v314 = vunpack.c.l.b16 %v112
    %v315 = vunpack.c.h.b16 %v112
    %v316 = vunpack.c.l.b16 %v113
    %v317 = vunpack.c.h.b16 %v113
    %v318 = vunpack.c.l.b16 %v114
    %v319 = vunpack.c.h.b16 %v114
    %v320 = vunpack.c.l.b16 %v115
    %v321 = vunpack.c.h.b16 %v115
    %v322 = vunpack.c.l.b16 %v116
    %v323 = vunpack.c.h.b16 %v116
    %v324 = vunpack.c.l.b16 %v117
    %v325 = vunpack.c.h.b16 %v117
    %v326 = vunpack.c.l.b16 %v118
    %v327 = vunpack.c.h.b16 %v118
    %v328 = vunpack.c.l.b16 %v119
    %v329 = vunpack.c.h.b16 %v119
    %v330 = vunpack.c.l.b16 %v120
    %v331 = vunpack.c.h.b16 %v120
    %v332 = vunpack.c.l.b16 %v121
    %v333 = vunpack.c.h.b16 %v121
    %v334 = vunpack.c.l.b16 %v122
    %v335 = vunpack.c.h.b16 %v122
    %v336 = vunpack.c.l.b16 %v123
    %v337 = vunpack.c.h.b16 %v123
    %v338 = vunpack.c.l.b16 %v124
    %v339 = vunpack.c.h.b16 %v124
    %v340 = vunpack.c.l.b16 %v125
    %v341 = vunpack.c.h.b16 %v125
    %v342 = vunpack.c.l.b16 %v126
    %v343 = vunpack.c.h.b16 %v126
    %v344 = vunpack.c.l.b16 %v127
    %v345 = vunpack.c.h.b16 %v127
    %v346 = vunpack.c.l.b16 %v128
    %v347 = vunpack.c.h.b16 %v128
    %v348 = vunpack.c.l.b16 %v129
    %v349 = vunpack.c.h.b16 %v129
    %v350 = vunpack.c.l.b16 %v130
    %v351 = vunpack.c.h.b16 %v130
    %v352 = vpack.c.b16 %v228, %v224
    %v353 = vpack.c.b16 %v229, %v225
    %v354 = vpack.c.b16 %v230, %v226
    %v355 = vpack.c.b16 %v231, %v227
    %v356 = vpack.c.b16 %v236, %v232
    %v357 = vpack.c.b16 %v237, %v233
    %v358 = vpack.c.b16 %v238, %v234
    %v359 = vpack.c.b16 %v239, %v235
    %v360 = vpack.c.b16 %v244, %v240
    %v361 = vpack.c.b16 %v245, %v241
    %v362 = vpack.c.b16 %v246, %v242
    %v363 = vpack.c.b16 %v247, %v243
    %v364 = vpack.c.b16 %v252, %v248
    %v365 = vpack.c.b16 %v253, %v249
    %v366 = vpack.c.b16 %v254, %v250
    %v367 = vpack.c.b16 %v255, %v251
    %v368 = vpack.c.b16 %v260, %v256
    %v369 = vpack.c.b16 %v261, %v257
    %v370 = vpack.c.b16 %v262, %v258
    %v371 = vpack.c.b16 %v263, %v259
    %v372 = vpack.c.b16 %v268, %v264
    %v373 = vpack.c.b16 %v269, %v265
    %v374 = vpack.c.b16 %v270, %v266
    %v375 = vpack.c.b16 %v271, %v267
    %v376 = vpack.c.b16 %v276, %v272
    %v377 = vpack.c.b16 %v277, %v273
    %v378 = vpack.c.b16 %v278, %v274
    %v379 = vpack.c.b16 %v279, %v275
    %v380 = vpack.c.b16 %v284, %v280
    %v381 = vpack.c.b16 %v285, %v281
    %v382 = vpack.c.b16 %v286, %v282
    %v383 = vpack.c.b16 %v287, %v283
    %v384 = vpack.c.b16 %v292, %v288
    %v385 = vpack.c.b16 %v293, %v289
    %v386 = vpack.c.b16 %v294, %v290
    %v387 = vpack.c.b16 %v295, %v291
    %v388 = vpack.c.b16 %v300, %v296
    %v389 = vpack.c.b16 %v301, %v297
    %v390 = vpack.c.b16 %v302, %v298
    %v391 = vpack.c.b16 %v303, %v299
    %v392 = vpack.c.b16 %v308, %v304
    %v393 = vpack.c.b16 %v309, %v305
    %v394 = vpack.c.b16 %v310, %v306
    %v395 = vpack.c.b16 %v311, %v307
    %v396 = vpack.c.b16 %v316, %v312
    %v397 = vpack.c.b16 %v317, %v313
    %v398 = vpack.c.b16 %v318, %v314
    %v399 = vpack.c.b16 %v319, %v315
    %v400 = vpack.c.b16 %v324, %v320
    %v401 = vpack.c.b16 %v325, %v321
    %v402 = vpack.c.b16 %v326, %v322
    %v403 = vpack.c.b16 %v327, %v323
    %v404 = vpack.c.b16 %v332, %v328
    %v405 = vpack.c.b16 %v333, %v329
    %v406 = vpack.c.b16 %v334, %v330
    %v407 = vpack.c.b16 %v335, %v331
    %v408 = vpack.c.b16 %v340, %v336
    %v409 = vpack.c.b16 %v341, %v337
    %v410 = vpack.c.b16 %v342, %v338
    %v411 = vpack.c.b16 %v343, %v339
    %v412 = vpack.c.b16 %v348, %v344
    %v413 = vpack.c.b16 %v349, %v345
    %v414 = vpack.c.b16 %v350, %v346
    %v415 = vpack.c.b16 %v351, %v347
    %480 = vmatprep.subr.bf16.mxu0 %v353
    %481 = vmatpush1.bf16.msra.mxu0 %v352
    %482 = vmatprep.subr.bf16.mxu0 %v357
    %483 = vmatpush1.bf16.msra.mxu0 %v356
    %484 = vmatprep.subr.bf16.mxu0 %v361
    %485 = vmatpush1.bf16.msra.mxu0 %v360
    %486 = vmatprep.subr.bf16.mxu0 %v365
    %487 = vmatpush1.bf16.msra.mxu0 %v364
    %488 = vmatprep.subr.bf16.mxu0 %v369
    %489 = vmatpush1.bf16.msra.mxu0 %v368
    %490 = vmatprep.subr.bf16.mxu0 %v373
    %491 = vmatpush1.bf16.msra.mxu0 %v372
    %492 = vmatprep.subr.bf16.mxu0 %v377
    %493 = vmatpush1.bf16.msra.mxu0 %v376
    %494 = vmatprep.subr.bf16.mxu0 %v381
    %495 = vmatpush1.bf16.msra.mxu0 %v380
    %496 = vmatprep.subr.bf16.mxu0 %v385
    %497 = vmatpush1.bf16.msra.mxu0 %v384
    %498 = vmatprep.subr.bf16.mxu0 %v389
    %499 = vmatpush1.bf16.msra.mxu0 %v388
    %500 = vmatprep.subr.bf16.mxu0 %v393
    %501 = vmatpush1.bf16.msra.mxu0 %v392
    %502 = vmatprep.subr.bf16.mxu0 %v397
    %503 = vmatpush1.bf16.msra.mxu0 %v396
    %504 = vmatprep.subr.bf16.mxu0 %v401
    %505 = vmatpush1.bf16.msra.mxu0 %v400
    %506 = vmatprep.subr.bf16.mxu0 %v405
    %507 = vmatpush1.bf16.msra.mxu0 %v404
    %508 = vmatprep.subr.bf16.mxu0 %v409
    %509 = vmatpush1.bf16.msra.mxu0 %v408
    %510 = vmatprep.subr.bf16.mxu0 %v413
    %511 = vmatpush1.bf16.msra.mxu0 %v412
    %512 = vmatprep.mubr.bf16.mxu0 %v157
    %513 = vmatmul.mubr.bf16.gmra.mrb[0].mxu0 %v156
    %v514 = vpop.f32.mrb[0].mxu0
    %v515 = vadd.f32 %v136, %v514
    %v516 = vpop.f32.mrb[0].mxu0
    %v517 = vadd.f32 %v140, %v516
    %v518 = vpop.f32.mrb[0].mxu0
    %v519 = vpop.f32.mrb[0].mxu0
    %520 = vdwg.mxu0
    %521 = vmatprep.subr.bf16.mxu0 %v355
    %522 = vmatpush1.bf16.msra.mxu0 %v354
    %523 = vmatprep.subr.bf16.mxu0 %v359
    %524 = vmatpush1.bf16.msra.mxu0 %v358
    %525 = vmatprep.subr.bf16.mxu0 %v363
    %526 = vmatpush1.bf16.msra.mxu0 %v362
    %527 = vmatprep.subr.bf16.mxu0 %v367
    %528 = vmatpush1.bf16.msra.mxu0 %v366
    %529 = vmatprep.subr.bf16.mxu0 %v371
    %530 = vmatpush1.bf16.msra.mxu0 %v370
    %531 = vmatprep.subr.bf16.mxu0 %v375
    %532 = vmatpush1.bf16.msra.mxu0 %v374
    %533 = vmatprep.subr.bf16.mxu0 %v379
    %534 = vmatpush1.bf16.msra.mxu0 %v378
    %535 = vmatprep.subr.bf16.mxu0 %v383
    %536 = vmatpush1.bf16.msra.mxu0 %v382
    %537 = vmatprep.subr.bf16.mxu0 %v387
    %538 = vmatpush1.bf16.msra.mxu0 %v386
    %539 = vmatprep.subr.bf16.mxu0 %v391
    %540 = vmatpush1.bf16.msra.mxu0 %v390
    %541 = vmatprep.subr.bf16.mxu0 %v395
    %542 = vmatpush1.bf16.msra.mxu0 %v394
    %543 = vmatprep.subr.bf16.mxu0 %v399
    %544 = vmatpush1.bf16.msra.mxu0 %v398
    %545 = vmatprep.subr.bf16.mxu0 %v403
    %546 = vmatpush1.bf16.msra.mxu0 %v402
    %547 = vmatprep.subr.bf16.mxu0 %v407
    %548 = vmatpush1.bf16.msra.mxu0 %v406
    %549 = vmatprep.subr.bf16.mxu0 %v411
    %550 = vmatpush1.bf16.msra.mxu0 %v410
    %551 = vmatprep.subr.bf16.mxu0 %v415
    %552 = vmatpush1.bf16.msra.mxu0 %v414
    %553 = vmatprep.mubr.bf16.mxu0 %v157
    %554 = vmatmul.mubr.bf16.gmra.mrb[0].mxu0 %v156
    %v555 = vpop.f32.mrb[0].mxu0
    %v556 = vadd.f32 %v144, %v555
    %v557 = vpop.f32.mrb[0].mxu0
    %v558 = vadd.f32 %v148, %v557
    %v559 = vpop.f32.mrb[0].mxu0
    %v560 = vpop.f32.mrb[0].mxu0
    %561 = vdwg.mxu0
    %v562 = vmul.f32 %v515, 0.2
    %v563 = vmul.f32 %v517, 0.2
    %v564 = vmul.f32 %v556, 0.2
    %v565 = vmul.f32 %v558, 0.2
    %v566 = vmax.f32 %v515, %v562
    %v567 = vmax.f32 %v517, %v563
    %v568 = vmax.f32 %v556, %v564
    %v569 = vmax.f32 %v558, %v565
    %v570 = vpack.c.bf16 %v566, %v566
    %v571 = vpack.c.bf16 %v567, %v567
    %v572 = vpack.c.bf16 %v568, %v568
    %v573 = vpack.c.bf16 %v569, %v569
    %v574 = vld [vmem:[#allocation7] sm:$0xff]
    %v575 = vld [vmem:[#allocation7 + $0x8] sm:$0xff]
    %v576 = vld [vmem:[#allocation7 + $0x10] sm:$0xff]
    %v577 = vld [vmem:[#allocation7 + $0x18] sm:$0xff]
    %v578 = vld [vmem:[#allocation7 + $0x20] sm:$0xff]
    %v579 = vld [vmem:[#allocation7 + $0x28] sm:$0xff]
    %v580 = vld [vmem:[#allocation7 + $0x30] sm:$0xff]
    %v581 = vld [vmem:[#allocation7 + $0x38] sm:$0xff]
    %v582 = vld [vmem:[#allocation7 + $0x40] sm:$0xff]
    %v583 = vld [vmem:[#allocation7 + $0x48] sm:$0xff]
    %v584 = vld [vmem:[#allocation7 + $0x50] sm:$0xff]
    %v585 = vld [vmem:[#allocation7 + $0x58] sm:$0xff]
    %v586 = vld [vmem:[#allocation7 + $0x60] sm:$0xff]
    %v587 = vld [vmem:[#allocation7 + $0x68] sm:$0xff]
    %v588 = vld [vmem:[#allocation7 + $0x70] sm:$0xff]
    %v589 = vld [vmem:[#allocation7 + $0x78] sm:$0xff]
    %v590 = vld [vmem:[#allocation7 + $0x80] sm:$0xff]
    %v591 = vld [vmem:[#allocation7 + $0x88] sm:$0xff]
    %v592 = vld [vmem:[#allocation7 + $0x90] sm:$0xff]
    %v593 = vld [vmem:[#allocation7 + $0x98] sm:$0xff]
    %v594 = vld [vmem:[#allocation7 + $0xa0] sm:$0xff]
    %v595 = vld [vmem:[#allocation7 + $0xa8] sm:$0xff]
    %v596 = vld [vmem:[#allocation7 + $0xb0] sm:$0xff]
    %v597 = vld [vmem:[#allocation7 + $0xb8] sm:$0xff]
    %v598 = vld [vmem:[#allocation7 + $0xc0] sm:$0xff]
    %v599 = vld [vmem:[#allocation7 + $0xc8] sm:$0xff]
    %v600 = vld [vmem:[#allocation7 + $0xd0] sm:$0xff]
    %v601 = vld [vmem:[#allocation7 + $0xd8] sm:$0xff]
    %v602 = vld [vmem:[#allocation7 + $0xe0] sm:$0xff]
    %v603 = vld [vmem:[#allocation7 + $0xe8] sm:$0xff]
    %v604 = vld [vmem:[#allocation7 + $0xf0] sm:$0xff]
    %v605 = vld [vmem:[#allocation7 + $0xf8] sm:$0xff]
    %v606 = vld [vmem:[#allocation7 + $0x100] sm:$0xff]
    %v607 = vld [vmem:[#allocation7 + $0x108] sm:$0xff]
    %v608 = vld [vmem:[#allocation7 + $0x110] sm:$0xff]
    %v609 = vld [vmem:[#allocation7 + $0x118] sm:$0xff]
    %v610 = vld [vmem:[#allocation7 + $0x120] sm:$0xff]
    %v611 = vld [vmem:[#allocation7 + $0x128] sm:$0xff]
    %v612 = vld [vmem:[#allocation7 + $0x130] sm:$0xff]
    %v613 = vld [vmem:[#allocation7 + $0x138] sm:$0xff]
    %v614 = vld [vmem:[#allocation7 + $0x140] sm:$0xff]
    %v615 = vld [vmem:[#allocation7 + $0x148] sm:$0xff]
    %v616 = vld [vmem:[#allocation7 + $0x150] sm:$0xff]
    %v617 = vld [vmem:[#allocation7 + $0x158] sm:$0xff]
    %v618 = vld [vmem:[#allocation7 + $0x160] sm:$0xff]
    %v619 = vld [vmem:[#allocation7 + $0x168] sm:$0xff]
    %v620 = vld [vmem:[#allocation7 + $0x170] sm:$0xff]
    %v621 = vld [vmem:[#allocation7 + $0x178] sm:$0xff]
    %v622 = vld [vmem:[#allocation7 + $0x180] sm:$0xff]
    %v623 = vld [vmem:[#allocation7 + $0x188] sm:$0xff]
    %v624 = vld [vmem:[#allocation7 + $0x190] sm:$0xff]
    %v625 = vld [vmem:[#allocation7 + $0x198] sm:$0xff]
    %v626 = vld [vmem:[#allocation7 + $0x1a0] sm:$0xff]
    %v627 = vld [vmem:[#allocation7 + $0x1a8] sm:$0xff]
    %v628 = vld [vmem:[#allocation7 + $0x1b0] sm:$0xff]
    %v629 = vld [vmem:[#allocation7 + $0x1b8] sm:$0xff]
    %v630 = vld [vmem:[#allocation7 + $0x1c0] sm:$0xff]
    %v631 = vld [vmem:[#allocation7 + $0x1c8] sm:$0xff]
    %v632 = vld [vmem:[#allocation7 + $0x1d0] sm:$0xff]
    %v633 = vld [vmem:[#allocation7 + $0x1d8] sm:$0xff]
    %v634 = vld [vmem:[#allocation7 + $0x1e0] sm:$0xff]
    %v635 = vld [vmem:[#allocation7 + $0x1e8] sm:$0xff]
    %v636 = vld [vmem:[#allocation7 + $0x1f0] sm:$0xff]
    %v637 = vld [vmem:[#allocation7 + $0x1f8] sm:$0xff]
    %v638 = vld [vmem:[%s4] sm:$0x3]
    %v640 = vlaneseq
    %v641 = vshrl.u32 %v640, 7
    %v642 = vsub.s32 0, %v641
    %v643 = vrot.slane %v638, %v642
    %v644 = vlaneseq
    %v645 = vshrl.u32 %v644, 7
    %v646 = vsub.s32 1, %v645
    %v647 = vrot.slane %v638, %v646
    %v714 = vunpack.c.l.b16 %v574
    %v715 = vunpack.c.h.b16 %v574
    %v716 = vunpack.c.l.b16 %v575
    %v717 = vunpack.c.h.b16 %v575
    %v718 = vunpack.c.l.b16 %v576
    %v719 = vunpack.c.h.b16 %v576
    %v720 = vunpack.c.l.b16 %v577
    %v721 = vunpack.c.h.b16 %v577
    %v722 = vunpack.c.l.b16 %v578
    %v723 = vunpack.c.h.b16 %v578
    %v724 = vunpack.c.l.b16 %v579
    %v725 = vunpack.c.h.b16 %v579
    %v726 = vunpack.c.l.b16 %v580
    %v727 = vunpack.c.h.b16 %v580
    %v728 = vunpack.c.l.b16 %v581
    %v729 = vunpack.c.h.b16 %v581
    %v730 = vunpack.c.l.b16 %v582
    %v731 = vunpack.c.h.b16 %v582
    %v732 = vunpack.c.l.b16 %v583
    %v733 = vunpack.c.h.b16 %v583
    %v734 = vunpack.c.l.b16 %v584
    %v735 = vunpack.c.h.b16 %v584
    %v736 = vunpack.c.l.b16 %v585
    %v737 = vunpack.c.h.b16 %v585
    %v738 = vunpack.c.l.b16 %v586
    %v739 = vunpack.c.h.b16 %v586
    %v740 = vunpack.c.l.b16 %v587
    %v741 = vunpack.c.h.b16 %v587
    %v742 = vunpack.c.l.b16 %v588
    %v743 = vunpack.c.h.b16 %v588
    %v744 = vunpack.c.l.b16 %v589
    %v745 = vunpack.c.h.b16 %v589
    %v746 = vunpack.c.l.b16 %v590
    %v747 = vunpack.c.h.b16 %v590
    %v748 = vunpack.c.l.b16 %v591
    %v749 = vunpack.c.h.b16 %v591
    %v750 = vunpack.c.l.b16 %v592
    %v751 = vunpack.c.h.b16 %v592
    %v752 = vunpack.c.l.b16 %v593
    %v753 = vunpack.c.h.b16 %v593
    %v754 = vunpack.c.l.b16 %v594
    %v755 = vunpack.c.h.b16 %v594
    %v756 = vunpack.c.l.b16 %v595
    %v757 = vunpack.c.h.b16 %v595
    %v758 = vunpack.c.l.b16 %v596
    %v759 = vunpack.c.h.b16 %v596
    %v760 = vunpack.c.l.b16 %v597
    %v761 = vunpack.c.h.b16 %v597
    %v762 = vunpack.c.l.b16 %v598
    %v763 = vunpack.c.h.b16 %v598
    %v764 = vunpack.c.l.b16 %v599
    %v765 = vunpack.c.h.b16 %v599
    %v766 = vunpack.c.l.b16 %v600
    %v767 = vunpack.c.h.b16 %v600
    %v768 = vunpack.c.l.b16 %v601
    %v769 = vunpack.c.h.b16 %v601
    %v770 = vunpack.c.l.b16 %v602
    %v771 = vunpack.c.h.b16 %v602
    %v772 = vunpack.c.l.b16 %v603
    %v773 = vunpack.c.h.b16 %v603
    %v774 = vunpack.c.l.b16 %v604
    %v775 = vunpack.c.h.b16 %v604
    %v776 = vunpack.c.l.b16 %v605
    %v777 = vunpack.c.h.b16 %v605
    %v778 = vunpack.c.l.b16 %v606
    %v779 = vunpack.c.h.b16 %v606
    %v780 = vunpack.c.l.b16 %v607
    %v781 = vunpack.c.h.b16 %v607
    %v782 = vunpack.c.l.b16 %v608
    %v783 = vunpack.c.h.b16 %v608
    %v784 = vunpack.c.l.b16 %v609
    %v785 = vunpack.c.h.b16 %v609
    %v786 = vunpack.c.l.b16 %v610
    %v787 = vunpack.c.h.b16 %v610
    %v788 = vunpack.c.l.b16 %v611
    %v789 = vunpack.c.h.b16 %v611
    %v790 = vunpack.c.l.b16 %v612
    %v791 = vunpack.c.h.b16 %v612
    %v792 = vunpack.c.l.b16 %v613
    %v793 = vunpack.c.h.b16 %v613
    %v794 = vunpack.c.l.b16 %v614
    %v795 = vunpack.c.h.b16 %v614
    %v796 = vunpack.c.l.b16 %v615
    %v797 = vunpack.c.h.b16 %v615
    %v798 = vunpack.c.l.b16 %v616
    %v799 = vunpack.c.h.b16 %v616
    %v800 = vunpack.c.l.b16 %v617
    %v801 = vunpack.c.h.b16 %v617
    %v802 = vunpack.c.l.b16 %v618
    %v803 = vunpack.c.h.b16 %v618
    %v804 = vunpack.c.l.b16 %v619
    %v805 = vunpack.c.h.b16 %v619
    %v806 = vunpack.c.l.b16 %v620
    %v807 = vunpack.c.h.b16 %v620
    %v808 = vunpack.c.l.b16 %v621
    %v809 = vunpack.c.h.b16 %v621
    %v810 = vunpack.c.l.b16 %v622
    %v811 = vunpack.c.h.b16 %v622
    %v812 = vunpack.c.l.b16 %v623
    %v813 = vunpack.c.h.b16 %v623
    %v814 = vunpack.c.l.b16 %v624
    %v815 = vunpack.c.h.b16 %v624
    %v816 = vunpack.c.l.b16 %v625
    %v817 = vunpack.c.h.b16 %v625
    %v818 = vunpack.c.l.b16 %v626
    %v819 = vunpack.c.h.b16 %v626
    %v820 = vunpack.c.l.b16 %v627
    %v821 = vunpack.c.h.b16 %v627
    %v822 = vunpack.c.l.b16 %v628
    %v823 = vunpack.c.h.b16 %v628
    %v824 = vunpack.c.l.b16 %v629
    %v825 = vunpack.c.h.b16 %v629
    %v826 = vunpack.c.l.b16 %v630
    %v827 = vunpack.c.h.b16 %v630
    %v828 = vunpack.c.l.b16 %v631
    %v829 = vunpack.c.h.b16 %v631
    %v830 = vunpack.c.l.b16 %v632
    %v831 = vunpack.c.h.b16 %v632
    %v832 = vunpack.c.l.b16 %v633
    %v833 = vunpack.c.h.b16 %v633
    %v834 = vunpack.c.l.b16 %v634
    %v835 = vunpack.c.h.b16 %v634
    %v836 = vunpack.c.l.b16 %v635
    %v837 = vunpack.c.h.b16 %v635
    %v838 = vunpack.c.l.b16 %v636
    %v839 = vunpack.c.h.b16 %v636
    %v840 = vunpack.c.l.b16 %v637
    %v841 = vunpack.c.h.b16 %v637
    %v842 = vpack.c.b16 %v716, %v714
    %v843 = vpack.c.b16 %v717, %v715
    %v844 = vpack.c.b16 %v720, %v718
    %v845 = vpack.c.b16 %v721, %v719
    %v846 = vpack.c.b16 %v724, %v722
    %v847 = vpack.c.b16 %v725, %v723
    %v848 = vpack.c.b16 %v728, %v726
    %v849 = vpack.c.b16 %v729, %v727
    %v850 = vpack.c.b16 %v732, %v730
    %v851 = vpack.c.b16 %v733, %v731
    %v852 = vpack.c.b16 %v736, %v734
    %v853 = vpack.c.b16 %v737, %v735
    %v854 = vpack.c.b16 %v740, %v738
    %v855 = vpack.c.b16 %v741, %v739
    %v856 = vpack.c.b16 %v744, %v742
    %v857 = vpack.c.b16 %v745, %v743
    %v858 = vpack.c.b16 %v748, %v746
    %v859 = vpack.c.b16 %v749, %v747
    %v860 = vpack.c.b16 %v752, %v750
    %v861 = vpack.c.b16 %v753, %v751
    %v862 = vpack.c.b16 %v756, %v754
    %v863 = vpack.c.b16 %v757, %v755
    %v864 = vpack.c.b16 %v760, %v758
    %v865 = vpack.c.b16 %v761, %v759
    %v866 = vpack.c.b16 %v764, %v762
    %v867 = vpack.c.b16 %v765, %v763
    %v868 = vpack.c.b16 %v768, %v766
    %v869 = vpack.c.b16 %v769, %v767
    %v870 = vpack.c.b16 %v772, %v770
    %v871 = vpack.c.b16 %v773, %v771
    %v872 = vpack.c.b16 %v776, %v774
    %v873 = vpack.c.b16 %v777, %v775
    %v874 = vpack.c.b16 %v780, %v778
    %v875 = vpack.c.b16 %v781, %v779
    %v876 = vpack.c.b16 %v784, %v782
    %v877 = vpack.c.b16 %v785, %v783
    %v878 = vpack.c.b16 %v788, %v786
    %v879 = vpack.c.b16 %v789, %v787
    %v880 = vpack.c.b16 %v792, %v790
    %v881 = vpack.c.b16 %v793, %v791
    %v882 = vpack.c.b16 %v796, %v794
    %v883 = vpack.c.b16 %v797, %v795
    %v884 = vpack.c.b16 %v800, %v798
    %v885 = vpack.c.b16 %v801, %v799
    %v886 = vpack.c.b16 %v804, %v802
    %v887 = vpack.c.b16 %v805, %v803
    %v888 = vpack.c.b16 %v808, %v806
    %v889 = vpack.c.b16 %v809, %v807
    %v890 = vpack.c.b16 %v812, %v810
    %v891 = vpack.c.b16 %v813, %v811
    %v892 = vpack.c.b16 %v816, %v814
    %v893 = vpack.c.b16 %v817, %v815
    %v894 = vpack.c.b16 %v820, %v818
    %v895 = vpack.c.b16 %v821, %v819
    %v896 = vpack.c.b16 %v824, %v822
    %v897 = vpack.c.b16 %v825, %v823
    %v898 = vpack.c.b16 %v828, %v826
    %v899 = vpack.c.b16 %v829, %v827
    %v900 = vpack.c.b16 %v832, %v830
    %v901 = vpack.c.b16 %v833, %v831
    %v902 = vpack.c.b16 %v836, %v834
    %v903 = vpack.c.b16 %v837, %v835
    %v904 = vpack.c.b16 %v840, %v838
    %v905 = vpack.c.b16 %v841, %v839
    %970 = vmatprep.subr.bf16.mxu0 %v843
    %971 = vmatpush1.bf16.msra.mxu0 %v842
    %972 = vmatprep.subr.bf16.mxu0 %v845
    %973 = vmatpush1.bf16.msra.mxu0 %v844
    %974 = vmatprep.subr.bf16.mxu0 %v847
    %975 = vmatpush1.bf16.msra.mxu0 %v846
    %976 = vmatprep.subr.bf16.mxu0 %v849
    %977 = vmatpush1.bf16.msra.mxu0 %v848
    %978 = vmatprep.subr.bf16.mxu0 %v851
    %979 = vmatpush1.bf16.msra.mxu0 %v850
    %980 = vmatprep.subr.bf16.mxu0 %v853
    %981 = vmatpush1.bf16.msra.mxu0 %v852
    %982 = vmatprep.subr.bf16.mxu0 %v855
    %983 = vmatpush1.bf16.msra.mxu0 %v854
    %984 = vmatprep.subr.bf16.mxu0 %v857
    %985 = vmatpush1.bf16.msra.mxu0 %v856
    %986 = vmatprep.subr.bf16.mxu0 %v859
    %987 = vmatpush1.bf16.msra.mxu0 %v858
    %988 = vmatprep.subr.bf16.mxu0 %v861
    %989 = vmatpush1.bf16.msra.mxu0 %v860
    %990 = vmatprep.subr.bf16.mxu0 %v863
    %991 = vmatpush1.bf16.msra.mxu0 %v862
    %992 = vmatprep.subr.bf16.mxu0 %v865
    %993 = vmatpush1.bf16.msra.mxu0 %v864
    %994 = vmatprep.subr.bf16.mxu0 %v867
    %995 = vmatpush1.bf16.msra.mxu0 %v866
    %996 = vmatprep.subr.bf16.mxu0 %v869
    %997 = vmatpush1.bf16.msra.mxu0 %v868
    %998 = vmatprep.subr.bf16.mxu0 %v871
    %999 = vmatpush1.bf16.msra.mxu0 %v870
    %1000 = vmatprep.subr.bf16.mxu0 %v873
    %1001 = vmatpush1.bf16.msra.mxu0 %v872
    %1002 = vmatprep.mubr.bf16.mxu0 %v571
    %1003 = vmatmul.mubr.bf16.gmra.mrb[0].mxu0 %v570
    %v1004 = vpop.f32.mrb[0].mxu0
    %v1005 = vadd.f32 %v643, %v1004
    %v1006 = vpop.f32.mrb[0].mxu0
    %v1007 = vadd.f32 %v647, %v1006
    %v1008 = vpop.f32.mrb[0].mxu0
    %v1009 = vpop.f32.mrb[0].mxu0
    %1010 = vdwg.mxu0
    %1011 = vmatprep.subr.bf16.mxu0 %v875
    %1012 = vmatpush1.bf16.msra.mxu0 %v874
    %1013 = vmatprep.subr.bf16.mxu0 %v877
    %1014 = vmatpush1.bf16.msra.mxu0 %v876
    %1015 = vmatprep.subr.bf16.mxu0 %v879
    %1016 = vmatpush1.bf16.msra.mxu0 %v878
    %1017 = vmatprep.subr.bf16.mxu0 %v881
    %1018 = vmatpush1.bf16.msra.mxu0 %v880
    %1019 = vmatprep.subr.bf16.mxu0 %v883
    %1020 = vmatpush1.bf16.msra.mxu0 %v882
    %1021 = vmatprep.subr.bf16.mxu0 %v885
    %1022 = vmatpush1.bf16.msra.mxu0 %v884
    %1023 = vmatprep.subr.bf16.mxu0 %v887
    %1024 = vmatpush1.bf16.msra.mxu0 %v886
    %1025 = vmatprep.subr.bf16.mxu0 %v889
    %1026 = vmatpush1.bf16.msra.mxu0 %v888
    %1027 = vmatprep.subr.bf16.mxu0 %v891
    %1028 = vmatpush1.bf16.msra.mxu0 %v890
    %1029 = vmatprep.subr.bf16.mxu0 %v893
    %1030 = vmatpush1.bf16.msra.mxu0 %v892
    %1031 = vmatprep.subr.bf16.mxu0 %v895
    %1032 = vmatpush1.bf16.msra.mxu0 %v894
    %1033 = vmatprep.subr.bf16.mxu0 %v897
    %1034 = vmatpush1.bf16.msra.mxu0 %v896
    %1035 = vmatprep.subr.bf16.mxu0 %v899
    %1036 = vmatpush1.bf16.msra.mxu0 %v898
    %1037 = vmatprep.subr.bf16.mxu0 %v901
    %1038 = vmatpush1.bf16.msra.mxu0 %v900
    %1039 = vmatprep.subr.bf16.mxu0 %v903
    %1040 = vmatpush1.bf16.msra.mxu0 %v902
    %1041 = vmatprep.subr.bf16.mxu0 %v905
    %1042 = vmatpush1.bf16.msra.mxu0 %v904
    %1043 = vmatprep.mubr.bf16.mxu0 %v573
    %1044 = vmatmul.mubr.bf16.gmra.mrb[0].mxu0 %v572
    %v1045 = vpop.f32.mrb[0].mxu0
    %v1046 = vadd.f32 %v1005, %v1045
    %v1047 = vpop.f32.mrb[0].mxu0
    %v1048 = vadd.f32 %v1007, %v1047
    %v1049 = vpop.f32.mrb[0].mxu0
    %v1050 = vpop.f32.mrb[0].mxu0
    %1051 = vdwg.mxu0
    %v1052 = vmul.f32 %v1046, 0.2
    %v1053 = vmul.f32 %v1048, 0.2
    %v1054 = vmax.f32 %v1046, %v1052
    %v1055 = vmax.f32 %v1048, %v1053
    %v1056 = vld [vmem:[%s5] sm:$0x3]
    %v1058 = vlaneseq
    %v1059 = vshrl.u32 %v1058, 7
    %v1060 = vsub.s32 0, %v1059
    %v1061 = vrot.slane %v1056, %v1060
    %v1062 = vlaneseq
    %v1063 = vshrl.u32 %v1062, 7
    %v1064 = vsub.s32 1, %v1063
    %v1065 = vrot.slane %v1056, %v1064
    %v1068 = vmul.f32 %v1054, %v1061
    %v1069 = vmul.f32 %v1055, %v1065
    %v1070 = vadd.f32 %v1068, %v1069
    %1071 = vadd.xlane.f32.xlu0 %v1070
    %v1072 = vpop.xlane.xlu0 %1071
    %s1073 = sld [smem:[#allocation2]]
    %v1074 = vstv %s1073
    %v1075 = vadd.f32 %v1072, %v1074
    %vm1076 = vcmask 7168
    %1077 = vst.msk [vmem:[%s7] sm:$0xff] %vm1076, %v1075
    // Predicated region
    $region42: #{tpu_custom_call.1} parent=1 // pred_check
      _
    $region43: #{tpu_custom_call.1} parent=1 // pred_check_branch
      %1079 = sbr.rel (0) target = $region45
    $region44: #{tpu_custom_call.1} parent=1 // pred_region
      _
    $region45: #{tpu_custom_call.1} parent=1 // pred_fallthru
      _
    // Predicated region
    $region46: #{tpu_custom_call.1} parent=1 // pred_check
      _
    $region47: #{tpu_custom_call.1} parent=1 // pred_check_branch
      %1081 = sbr.rel (0) target = $region49
    $region48: #{tpu_custom_call.1} parent=1 // pred_region
      _
    $region49: #{tpu_custom_call.1} parent=1 // pred_fallthru
      _
    %1082 = vsyncpa [#allocation4], 1
    %1083 = vsyncpa [#allocation6], 1

</llo_original>
